<compile_context>
chip_gen: v7x
topology: tpu7x:2x2x1
jax: 0.10.0
libtpu: 0.0.40
codegen_flags: <defaults>
</compile_context>

<pallas_src>
import functools

import jax
import jax.numpy as jnp
from jax import lax
from jax.experimental import pallas as pl
from jax.experimental.pallas import tpu as pltpu


def _tap_masks(H, W):
    """(9, 1, H*W) float32 masks: 1 where the shifted source pixel is in-bounds."""
    HW = H * W
    pos = jnp.arange(HW, dtype=jnp.int32)
    hh = pos // W
    ww = pos % W
    rows = []
    for kh in range(3):
        for kw in range(3):
            oh, ow = kh - 1, kw - 1
            ok = ((hh + oh >= 0) & (hh + oh < H) &
                  (ww + ow >= 0) & (ww + ow < W))
            rows.append(ok.astype(jnp.float32))
    return jnp.stack(rows, axis=0).reshape(9, 1, HW)


def _resblock_kernel(x_ref, wT_ref, b_ref, mask_ref, o_ref, imcol_ref, *,
                     W, C, CP, use_relu):
    """One batch element per grid step.

    x_ref    : (1, C, H*W)      NCHW image flattened spatially (lane-dense)
    wT_ref   : (C, 9*CP)        folded weights, [co, tap*CP + ci]
    b_ref    : (C, 1)           folded bias
    mask_ref : (9, 1, H*W)      border-validity masks per tap
    o_ref    : (1, C, H*W)      output (lane-dense)
    imcol_ref: (9*CP, H*W) f32  im2col scratch (VMEM)
    """
    HW = x_ref.shape[-1]

    # Zero the padded (unused) im2col rows once; they stay zero afterwards.
    if CP != C:
        @pl.when(pl.program_id(0) == 0)
        def _():
            imcol_ref[...] = jnp.zeros_like(imcol_ref)

    x = x_ref[0].astype(jnp.float32)                 # (C, HW)

    # Build im2col: each 3x3 tap is a lane rotation of the flattened image,
    # with wrapped border lanes zeroed by the precomputed mask.  Each tap is
    # stored immediately into the scratch (bounded liveness).
    for kh in range(3):
        for kw in range(3):
            tap = kh * 3 + kw
            d = (kh - 1) * W + (kw - 1)              # flat source offset
            if d == 0:                               # center tap: no shift/mask
                shifted = x
            else:
                shifted = pltpu.roll(x, shift=(-d) % HW, axis=1)
                shifted = shifted * mask_ref[tap]    # (C,HW) * (1,HW)
            imcol_ref[pl.ds(tap * CP, C), :] = shifted

    # Single MXU matmul over the full K = 9*CP contraction, f32 accumulate.
    acc = jnp.dot(wT_ref[...], imcol_ref[...],
                  preferred_element_type=jnp.float32)    # (C, HW)
    acc = acc + b_ref[...]                               # bias (folded), once
    if use_relu:
        acc = jnp.maximum(acc, 0.0)
    o_ref[0] = acc.astype(o_ref.dtype)


def residual_block(x_nchw, w3_hwio, b3, w1_io, b1, *,
                   multiplier=1.0, use_relu=True):
    """Pallas ResidualBlock.forward: act(mult * conv3x3(x) + conv1x1(x)).

    x_nchw : (N, C, H, W) float32
    w3_hwio: (3, 3, C, C)  3x3 conv weights (HWIO)
    b3     : (C,)          3x3 conv bias
    w1_io  : (C, C)        1x1 conv weights (Cin, Cout)
    b1     : (C,)          1x1 conv bias
    returns: (N, C, H, W) float32
    """
    N, C, H, W = x_nchw.shape
    HW = H * W
    CP = C if C % 8 == 0 else ((C + 7) // 8) * 8     # 8-sublane aligned tap blocks

    # --- fold skip conv + multiplier into the 3x3 conv (exact algebra) ---
    #   mult*(W3*x + b3) + (W1*x + b1)  ==  Wf*x + bf
    wf = multiplier * w3_hwio
    wf = wf.at[1, 1].add(w1_io)
    bf = multiplier * b3 + b1

    # (kh, kw, ci, co) -> (co, tap, ci), pad ci to CP, flatten to (co, 9*CP)
    w_oti = jnp.transpose(wf, (3, 0, 1, 2)).reshape(C, 9, C)
    if CP != C:
        w_oti = jnp.pad(w_oti, ((0, 0), (0, 0), (0, CP - C)))
    wT = w_oti.reshape(C, 9 * CP).astype(jnp.float32)
    b2 = bf.reshape(C, 1).astype(jnp.float32)
    masks = _tap_masks(H, W)

    # Free (row-major) reshape: NCHW -> (N, C, H*W); no transpose, no jnp.pad.
    x2d = x_nchw.reshape(N, C, HW)

    kernel = functools.partial(_resblock_kernel, W=W, C=C, CP=CP,
                               use_relu=use_relu)

    out2d = pl.pallas_call(
        kernel,
        out_shape=jax.ShapeDtypeStruct((N, C, HW), x_nchw.dtype),
        grid=(N,),
        in_specs=[
            pl.BlockSpec((1, C, HW), lambda n: (n, 0, 0)),     # image
            pl.BlockSpec((C, 9 * CP), lambda n: (0, 0)),       # folded weights
            pl.BlockSpec((C, 1), lambda n: (0, 0)),            # folded bias
            pl.BlockSpec((9, 1, HW), lambda n: (0, 0, 0)),     # tap masks
        ],
        out_specs=pl.BlockSpec((1, C, HW), lambda n: (n, 0, 0)),
        scratch_shapes=[pltpu.VMEM((9 * CP, HW), jnp.float32)],
        compiler_params=pltpu.CompilerParams(
            dimension_semantics=("parallel",),
            vmem_limit_bytes=64 * 1024 * 1024),
    )(x2d, wT, b2, masks)

    return out2d.reshape(N, C, H, W)


def _reference(x, w3_hwio, b3, w1_io, b1, *, multiplier=1.0, use_relu=True):
    """Pure-JAX reference (lax.conv) for correctness checking (NCHW)."""
    C = x.shape[1]
    dn3 = lax.conv_dimension_numbers(x.shape, w3_hwio.shape,
                                     ("NCHW", "HWIO", "NCHW"))
    res = lax.conv_general_dilated(x, w3_hwio, (1, 1), "SAME",
                                   dimension_numbers=dn3)
    res = res + b3[None, :, None, None]
    w1_hwio = w1_io.reshape(1, 1, C, C)
    dn1 = lax.conv_dimension_numbers(x.shape, w1_hwio.shape,
                                     ("NCHW", "HWIO", "NCHW"))
    skip = lax.conv_general_dilated(x, w1_hwio, (1, 1), "SAME",
                                    dimension_numbers=dn1)
    skip = skip + b1[None, :, None, None]
    out = multiplier * res + skip
    if use_relu:
        out = jnp.maximum(out, 0.0)
    return out


if __name__ == "__main__":
    N, C, H, W = 2, 4, 16, 16
    key = jax.random.PRNGKey(0)
    kx, kw3, kb3, kw1, kb1 = jax.random.split(key, 5)

    x = jax.random.normal(kx, (N, C, H, W), jnp.float32)
    w3 = jax.random.normal(kw3, (3, 3, C, C), jnp.float32) * 0.1   # HWIO
    b3 = jax.random.normal(kb3, (C,), jnp.float32) * 0.1
    w1 = jax.random.normal(kw1, (C, C), jnp.float32) * 0.1          # 1x1 conv (Cin,Cout)
    b1 = jax.random.normal(kb1, (C,), jnp.float32) * 0.1

    out = residual_block(x, w3, b3, w1, b1, multiplier=1.0, use_relu=True)
    out = jax.block_until_ready(out)

    ref = _reference(x, w3, b3, w1, b1, multiplier=1.0, use_relu=True)
    assert out.shape == (N, C, H, W)
    assert jnp.allclose(out, ref, atol=1e-4, rtol=1e-4), "mismatch vs reference"

    print("KERNEL_OK")
</pallas_src>

<mosaic_0001>
module attributes {stable_mosaic.version = 11 : i64} {
  func.func @_resblock_kernel(%arg0: i32, %arg1: memref<1x4x256xf32, #tpu.memory_space<vmem>>, %arg2: memref<4x72xf32, #tpu.memory_space<vmem>>, %arg3: memref<4x1xf32, #tpu.memory_space<vmem>>, %arg4: memref<9x1x256xf32, #tpu.memory_space<vmem>>, %arg5: memref<1x4x256xf32, #tpu.memory_space<vmem>>, %arg6: memref<72x256xf32, #tpu.memory_space<vmem>>) attributes {dimension_semantics = [#tpu.dimension_semantics<parallel>], iteration_bounds = array<i64: 2>, scalar_prefetch = 0 : i64, scratch_operands = 1 : i64, tpu.core_type = #tpu.core_type<tc>, window_params = [{transform_indices = @transform_0, window_bounds = array<i64: 1, 4, 256>}, {pipeline_mode = #tpu.pipeline_mode<synchronous>, transform_indices = @transform_1, window_bounds = array<i64: 4, 72>}, {pipeline_mode = #tpu.pipeline_mode<synchronous>, transform_indices = @transform_2, window_bounds = array<i64: 4, 1>}, {pipeline_mode = #tpu.pipeline_mode<synchronous>, transform_indices = @transform_3, window_bounds = array<i64: 9, 1, 256>}, {transform_indices = @transform_4, window_bounds = array<i64: 1, 4, 256>}]} {
    %c0_i32 = arith.constant 0 : i32
    %0 = arith.cmpi eq, %arg0, %c0_i32 : i32
    %1 = arith.extui %0 : i1 to i32
    %c0_i32_0 = arith.constant 0 : i32
    %2 = arith.cmpi ne, %1, %c0_i32_0 : i32
    scf.if %2 {
      %cst_41 = arith.constant 0.000000e+00 : f32
      %65 = vector.broadcast %cst_41 : f32 to vector<72x256xf32>
      %c0_42 = arith.constant 0 : index
      %c0_43 = arith.constant 0 : index
      %66 = vector.load %arg6[%c0_42, %c0_43] : memref<72x256xf32, #tpu.memory_space<vmem>>, vector<72x256xf32>
      tpu.vector_store %arg6[%c0_42, %c0_43], %65 {strides = array<i32>} : memref<72x256xf32, #tpu.memory_space<vmem>>, vector<72x256xf32>,
    } else {
    }
    %c0 = arith.constant 0 : index
    %c0_1 = arith.constant 0 : index
    %c0_2 = arith.constant 0 : index
    %3 = vector.load %arg1[%c0, %c0_1, %c0_2] : memref<1x4x256xf32, #tpu.memory_space<vmem>>, vector<1x4x256xf32>
    %4 = vector.shape_cast %3 : vector<1x4x256xf32> to vector<4x256xf32>
    %c17_i32 = arith.constant 17 : i32
    %5 = tpu.dynamic_rotate %4 by %c17_i32 dim 1 : vector<4x256xf32>, i32 -> vector<4x256xf32>
    %c0_3 = arith.constant 0 : index
    %c0_4 = arith.constant 0 : index
    %c0_5 = arith.constant 0 : index
    %6 = vector.load %arg4[%c0_3, %c0_4, %c0_5] : memref<9x1x256xf32, #tpu.memory_space<vmem>>, vector<1x1x256xf32>
    %7 = vector.shape_cast %6 : vector<1x1x256xf32> to vector<1x256xf32>
    %8 = vector.broadcast %7 : vector<1x256xf32> to vector<4x256xf32>
    %9 = arith.mulf %5, %8 : vector<4x256xf32>
    %c0_6 = arith.constant 0 : index
    %c0_7 = arith.constant 0 : index
    %10 = vector.load %arg6[%c0_6, %c0_7] : memref<72x256xf32, #tpu.memory_space<vmem>>, vector<4x256xf32>
    tpu.vector_store %arg6[%c0_6, %c0_7], %9 {strides = array<i32>} : memref<72x256xf32, #tpu.memory_space<vmem>>, vector<4x256xf32>,
    %c16_i32 = arith.constant 16 : i32
    %11 = tpu.dynamic_rotate %4 by %c16_i32 dim 1 : vector<4x256xf32>, i32 -> vector<4x256xf32>
    %c1 = arith.constant 1 : index
    %c0_8 = arith.constant 0 : index
    %c0_9 = arith.constant 0 : index
    %12 = vector.load %arg4[%c1, %c0_8, %c0_9] : memref<9x1x256xf32, #tpu.memory_space<vmem>>, vector<1x1x256xf32>
    %13 = vector.shape_cast %12 : vector<1x1x256xf32> to vector<1x256xf32>
    %14 = vector.broadcast %13 : vector<1x256xf32> to vector<4x256xf32>
    %15 = arith.mulf %11, %14 : vector<4x256xf32>
    %c8 = arith.constant 8 : index
    %c0_10 = arith.constant 0 : index
    %16 = vector.load %arg6[%c8, %c0_10] : memref<72x256xf32, #tpu.memory_space<vmem>>, vector<4x256xf32>
    tpu.vector_store %arg6[%c8, %c0_10], %15 {strides = array<i32>} : memref<72x256xf32, #tpu.memory_space<vmem>>, vector<4x256xf32>,
    %c15_i32 = arith.constant 15 : i32
    %17 = tpu.dynamic_rotate %4 by %c15_i32 dim 1 : vector<4x256xf32>, i32 -> vector<4x256xf32>
    %c2 = arith.constant 2 : index
    %c0_11 = arith.constant 0 : index
    %c0_12 = arith.constant 0 : index
    %18 = vector.load %arg4[%c2, %c0_11, %c0_12] : memref<9x1x256xf32, #tpu.memory_space<vmem>>, vector<1x1x256xf32>
    %19 = vector.shape_cast %18 : vector<1x1x256xf32> to vector<1x256xf32>
    %20 = vector.broadcast %19 : vector<1x256xf32> to vector<4x256xf32>
    %21 = arith.mulf %17, %20 : vector<4x256xf32>
    %c16 = arith.constant 16 : index
    %c0_13 = arith.constant 0 : index
    %22 = vector.load %arg6[%c16, %c0_13] : memref<72x256xf32, #tpu.memory_space<vmem>>, vector<4x256xf32>
    tpu.vector_store %arg6[%c16, %c0_13], %21 {strides = array<i32>} : memref<72x256xf32, #tpu.memory_space<vmem>>, vector<4x256xf32>,
    %c1_i32 = arith.constant 1 : i32
    %23 = tpu.dynamic_rotate %4 by %c1_i32 dim 1 : vector<4x256xf32>, i32 -> vector<4x256xf32>
    %c3 = arith.constant 3 : index
    %c0_14 = arith.constant 0 : index
    %c0_15 = arith.constant 0 : index
    %24 = vector.load %arg4[%c3, %c0_14, %c0_15] : memref<9x1x256xf32, #tpu.memory_space<vmem>>, vector<1x1x256xf32>
    %25 = vector.shape_cast %24 : vector<1x1x256xf32> to vector<1x256xf32>
    %26 = vector.broadcast %25 : vector<1x256xf32> to vector<4x256xf32>
    %27 = arith.mulf %23, %26 : vector<4x256xf32>
    %c24 = arith.constant 24 : index
    %c0_16 = arith.constant 0 : index
    %28 = vector.load %arg6[%c24, %c0_16] : memref<72x256xf32, #tpu.memory_space<vmem>>, vector<4x256xf32>
    tpu.vector_store %arg6[%c24, %c0_16], %27 {strides = array<i32>} : memref<72x256xf32, #tpu.memory_space<vmem>>, vector<4x256xf32>,
    %c32 = arith.constant 32 : index
    %c0_17 = arith.constant 0 : index
    %29 = vector.load %arg6[%c32, %c0_17] : memref<72x256xf32, #tpu.memory_space<vmem>>, vector<4x256xf32>
    tpu.vector_store %arg6[%c32, %c0_17], %4 {strides = array<i32>} : memref<72x256xf32, #tpu.memory_space<vmem>>, vector<4x256xf32>,
    %c255_i32 = arith.constant 255 : i32
    %30 = tpu.dynamic_rotate %4 by %c255_i32 dim 1 : vector<4x256xf32>, i32 -> vector<4x256xf32>
    %c5 = arith.constant 5 : index
    %c0_18 = arith.constant 0 : index
    %c0_19 = arith.constant 0 : index
    %31 = vector.load %arg4[%c5, %c0_18, %c0_19] : memref<9x1x256xf32, #tpu.memory_space<vmem>>, vector<1x1x256xf32>
    %32 = vector.shape_cast %31 : vector<1x1x256xf32> to vector<1x256xf32>
    %33 = vector.broadcast %32 : vector<1x256xf32> to vector<4x256xf32>
    %34 = arith.mulf %30, %33 : vector<4x256xf32>
    %c40 = arith.constant 40 : index
    %c0_20 = arith.constant 0 : index
    %35 = vector.load %arg6[%c40, %c0_20] : memref<72x256xf32, #tpu.memory_space<vmem>>, vector<4x256xf32>
    tpu.vector_store %arg6[%c40, %c0_20], %34 {strides = array<i32>} : memref<72x256xf32, #tpu.memory_space<vmem>>, vector<4x256xf32>,
    %c241_i32 = arith.constant 241 : i32
    %36 = tpu.dynamic_rotate %4 by %c241_i32 dim 1 : vector<4x256xf32>, i32 -> vector<4x256xf32>
    %c6 = arith.constant 6 : index
    %c0_21 = arith.constant 0 : index
    %c0_22 = arith.constant 0 : index
    %37 = vector.load %arg4[%c6, %c0_21, %c0_22] : memref<9x1x256xf32, #tpu.memory_space<vmem>>, vector<1x1x256xf32>
    %38 = vector.shape_cast %37 : vector<1x1x256xf32> to vector<1x256xf32>
    %39 = vector.broadcast %38 : vector<1x256xf32> to vector<4x256xf32>
    %40 = arith.mulf %36, %39 : vector<4x256xf32>
    %c48 = arith.constant 48 : index
    %c0_23 = arith.constant 0 : index
    %41 = vector.load %arg6[%c48, %c0_23] : memref<72x256xf32, #tpu.memory_space<vmem>>, vector<4x256xf32>
    tpu.vector_store %arg6[%c48, %c0_23], %40 {strides = array<i32>} : memref<72x256xf32, #tpu.memory_space<vmem>>, vector<4x256xf32>,
    %c240_i32 = arith.constant 240 : i32
    %42 = tpu.dynamic_rotate %4 by %c240_i32 dim 1 : vector<4x256xf32>, i32 -> vector<4x256xf32>
    %c7 = arith.constant 7 : index
    %c0_24 = arith.constant 0 : index
    %c0_25 = arith.constant 0 : index
    %43 = vector.load %arg4[%c7, %c0_24, %c0_25] : memref<9x1x256xf32, #tpu.memory_space<vmem>>, vector<1x1x256xf32>
    %44 = vector.shape_cast %43 : vector<1x1x256xf32> to vector<1x256xf32>
    %45 = vector.broadcast %44 : vector<1x256xf32> to vector<4x256xf32>
    %46 = arith.mulf %42, %45 : vector<4x256xf32>
    %c56 = arith.constant 56 : index
    %c0_26 = arith.constant 0 : index
    %47 = vector.load %arg6[%c56, %c0_26] : memref<72x256xf32, #tpu.memory_space<vmem>>, vector<4x256xf32>
    tpu.vector_store %arg6[%c56, %c0_26], %46 {strides = array<i32>} : memref<72x256xf32, #tpu.memory_space<vmem>>, vector<4x256xf32>,
    %c239_i32 = arith.constant 239 : i32
    %48 = tpu.dynamic_rotate %4 by %c239_i32 dim 1 : vector<4x256xf32>, i32 -> vector<4x256xf32>
    %c8_27 = arith.constant 8 : index
    %c0_28 = arith.constant 0 : index
    %c0_29 = arith.constant 0 : index
    %49 = vector.load %arg4[%c8_27, %c0_28, %c0_29] : memref<9x1x256xf32, #tpu.memory_space<vmem>>, vector<1x1x256xf32>
    %50 = vector.shape_cast %49 : vector<1x1x256xf32> to vector<1x256xf32>
    %51 = vector.broadcast %50 : vector<1x256xf32> to vector<4x256xf32>
    %52 = arith.mulf %48, %51 : vector<4x256xf32>
    %c64 = arith.constant 64 : index
    %c0_30 = arith.constant 0 : index
    %53 = vector.load %arg6[%c64, %c0_30] : memref<72x256xf32, #tpu.memory_space<vmem>>, vector<4x256xf32>
    tpu.vector_store %arg6[%c64, %c0_30], %52 {strides = array<i32>} : memref<72x256xf32, #tpu.memory_space<vmem>>, vector<4x256xf32>,
    %c0_31 = arith.constant 0 : index
    %c0_32 = arith.constant 0 : index
    %54 = vector.load %arg2[%c0_31, %c0_32] : memref<4x72xf32, #tpu.memory_space<vmem>>, vector<4x72xf32>
    %c0_33 = arith.constant 0 : index
    %c0_34 = arith.constant 0 : index
    %55 = vector.load %arg6[%c0_33, %c0_34] : memref<72x256xf32, #tpu.memory_space<vmem>>, vector<72x256xf32>
    %cst = arith.constant dense<0.000000e+00> : vector<4x256xf32>
    %56 = tpu.matmul %54, %55, %cst {dimension_numbers = #tpu.dot_dimension_numbers<[1], [0], [0], [1], [0, 0, 1, 1], [], []>} : vector<4x72xf32>, vector<72x256xf32>, vector<4x256xf32> -> vector<4x256xf32>
    %c0_35 = arith.constant 0 : index
    %c0_36 = arith.constant 0 : index
    %57 = vector.load %arg3[%c0_35, %c0_36] : memref<4x1xf32, #tpu.memory_space<vmem>>, vector<4x1xf32>
    %58 = vector.broadcast %57 : vector<4x1xf32> to vector<4x256xf32>
    %59 = arith.addf %56, %58 : vector<4x256xf32>
    %cst_37 = arith.constant 0.000000e+00 : f32
    %60 = vector.broadcast %cst_37 : f32 to vector<4x256xf32>
    %61 = arith.maximumf %59, %60 : vector<4x256xf32>
    %c0_38 = arith.constant 0 : index
    %c0_39 = arith.constant 0 : index
    %c0_40 = arith.constant 0 : index
    %62 = vector.load %arg5[%c0_38, %c0_39, %c0_40] : memref<1x4x256xf32, #tpu.memory_space<vmem>>, vector<1x4x256xf32>
    %63 = vector.shape_cast %62 : vector<1x4x256xf32> to vector<4x256xf32>
    %64 = vector.shape_cast %61 : vector<4x256xf32> to vector<1x4x256xf32>
    tpu.vector_store %arg5[%c0_38, %c0_39, %c0_40], %64 {strides = array<i32>} : memref<1x4x256xf32, #tpu.memory_space<vmem>>, vector<1x4x256xf32>,
    return
  }
  func.func @transform_0(%arg0: i32) -> (i32, i32, i32) {
    %c0_i32 = arith.constant 0 : i32
    %c0_i32_0 = arith.constant 0 : i32
    %c0_i32_1 = arith.constant 0 : i32
    return %arg0, %c0_i32, %c0_i32_0 : i32, i32, i32
  }
  func.func @transform_1(%arg0: i32) -> (i32, i32) {
    %c0_i32 = arith.constant 0 : i32
    %c0_i32_0 = arith.constant 0 : i32
    %c0_i32_1 = arith.constant 0 : i32
    return %c0_i32, %c0_i32_0 : i32, i32
  }
  func.func @transform_2(%arg0: i32) -> (i32, i32) {
    %c0_i32 = arith.constant 0 : i32
    %c0_i32_0 = arith.constant 0 : i32
    %c0_i32_1 = arith.constant 0 : i32
    return %c0_i32, %c0_i32_0 : i32, i32
  }
  func.func @transform_3(%arg0: i32) -> (i32, i32, i32) {
    %c0_i32 = arith.constant 0 : i32
    %c0_i32_0 = arith.constant 0 : i32
    %c0_i32_1 = arith.constant 0 : i32
    %c0_i32_2 = arith.constant 0 : i32
    return %c0_i32, %c0_i32_0, %c0_i32_1 : i32, i32, i32
  }
  func.func @transform_4(%arg0: i32) -> (i32, i32, i32) {
    %c0_i32 = arith.constant 0 : i32
    %c0_i32_0 = arith.constant 0 : i32
    %c0_i32_1 = arith.constant 0 : i32
    return %arg0, %c0_i32, %c0_i32_0 : i32, i32, i32
  }
}

</mosaic_0001>

<llo_original>
// kernel: tpu_custom_call.1
$region0: #{tpu_custom_call.1}
  #allocation0 [shape = 'u32[]', space=smem, size = 0x4, offset = 0x4, fixed_abs, tag = 'smem constant byte address 0x4 - core index']
  #allocation1 [shape = 'u32[144,128]{1,0:T(1,128)}', space=vmem, size = 0x12000, scoped, tag = 'internal scratch']
  #allocation2 [shape = 'f32[72,256]{1,0:T(8,128)}', space=vmem, size = 0x12000, scoped, tag = 'scratch operand']
  %s0 = inlined_call_operand.hbm [shape: f32[2,4,256], index: 0, kind: input, shape index: {}]
  %s1 = inlined_call_operand.hbm [shape: f32[4,72], index: 1, kind: input, shape index: {}]
  %s2 = inlined_call_operand.hbm [shape: f32[4,1], index: 2, kind: input, shape index: {}]
  %s3 = inlined_call_operand.hbm [shape: f32[9,1,256], index: 3, kind: input, shape index: {}]
  %s4 = inlined_call_operand.hbm [shape: f32[2,4,256], index: 4, kind: output, shape index: {}]
  %s5 = sld [smem:[#allocation0]]
  $region69: #{tpu_custom_call.1} parent=0
    _
  %s7 = ssub.s32 1, %s5
  %s8 = scalar_select 0, %s7, %s5
  $region1: #{tpu_custom_call.1} parent=0
    #allocation3 [shape = 'u8[8192]{0}', space=vmem, size = 0x2000, scoped, tag = 'input window, operand 0']
    #allocation4 [shape = 's32[2]{0}', space=sflag, size = 0x8, scoped, tag = 'scoped memory for tpu_custom_call.1']
    #allocation5 [shape = 's32[2]{0}', space=sflag, size = 0x8, scoped, tag = 'scoped memory for tpu_custom_call.1']
    #allocation6 [shape = 'u8[2048]{0}', space=vmem, size = 0x800, scoped, tag = 'input window, operand 1, single buffered']
    #allocation7 [shape = 's32[1]{0}', space=sflag, size = 0x4, scoped, tag = 'scoped memory for tpu_custom_call.1']
    #allocation8 [shape = 'u8[2048]{0}', space=vmem, size = 0x800, scoped, tag = 'input window, operand 2, single buffered']
    #allocation9 [shape = 'u8[9216]{0}', space=vmem, size = 0x2400, scoped, tag = 'input window, operand 3, single buffered']
    #allocation10 [shape = 's32[1]{0}', space=sflag, size = 0x4, scoped, tag = 'scoped memory for tpu_custom_call.1']
    #allocation11 [shape = 'u8[8192]{0}', space=vmem, size = 0x2000, scoped, tag = 'output window, operand 0']
    %9 = vsyncpa [#allocation4], 0
    %s10 = scalar_lea.sflag [#allocation4], 1
    %11 = vsyncpa %s10, 0
    %12 = vsyncpa [#allocation7], 0
    %13 = vsyncpa [#allocation10], 0
    %14 = vsyncpa [#allocation5], 0
    %s15 = scalar_lea.sflag [#allocation5], 1
    %16 = vsyncpa %s15, 0
    loop: start=0, step=1, limit=4
    $region2: #{tpu_custom_call.1} parent=1 // loop_pre_header
      _
    $region3: #{tpu_custom_call.1} parent=1 // loop_header
      %s18 = sphi 0, %s22
      %p19 = scmp.ge.s32.totalorder %s18, 4
      %s28 = sphi 0, %s30
      %s31 = sphi 0, %s28
      %s32 = sphi 0, %s31
      %s48 = sphi 0, %s32
      %s52 = sphi 0, %s52
      %s54 = sphi 0, %s52
      %s55 = sphi 0, %s54
      %s69 = sphi 0, %s55
      %s73 = sphi 0, %s73
      %s75 = sphi 0, %s73
      %s76 = sphi 0, %s75
      %s90 = sphi 0, %s76
      %s94 = sphi 0, %s94
      %s96 = sphi 0, %s94
      %s97 = sphi 0, %s96
      %s111 = sphi 0, %s97
      %s117 = sphi 0, %s119
      %s120 = sphi 0, %s117
      %s121 = sphi 0, %s120
      %s137 = sphi 0, %s121
    $region4: #{tpu_custom_call.1} parent=1 // loop_header_branch
      %21 = sbr.rel (%p19) target = $region8
    $region5: #{tpu_custom_call.1} parent=1 // loop_body
      %s23 = ssub.s32 %s18, 1
      %s24 = ssub.s32 %s18, 2
      %s25 = sadd.s32 %s18, 1
      %s26 = ssub.s32 %s18, %s25
      %p27 = scmp.eq.s32.totalorder %s26, 0
      %s29 = sadd.s32 %s28, 1
      %s30 = scalar_select %p27, %s28, %s29
      %p33 = pneg %p27
      %p34 = scmp.eq.s32.totalorder %s18, 1
      %p35 = por %p33, %p34
      %p36 = scmp.ne.s32.totalorder %s28, %s31
      %p37 = scmp.eq.s32.totalorder %s18, 0
      %p38 = por %p36, %p37
      %p39 = scmp.ne.s32.totalorder %s28, %s31
      %p40 = scmp.eq.s32.totalorder %s23, 1
      %p41 = por %p39, %p40
      %p42 = scmp.ne.s32.totalorder %s31, %s32
      %p43 = scmp.eq.s32.totalorder %s23, 0
      %p44 = por %p42, %p43
      %p45 = scmp.ne.s32.totalorder %s31, %s32
      %p46 = scmp.eq.s32.totalorder %s24, 1
      %p47 = por %p45, %p46
      %p49 = scmp.ne.s32.totalorder %s32, %s48
      %p50 = scmp.eq.s32.totalorder %s24, 0
      %p51 = por %p49, %p50
      %s53 = sadd.s32 %s52, 1
      %p56 = scmp.eq.s32.totalorder %s18, 1
      %p57 = scmp.ne.s32.totalorder %s52, %s54
      %p58 = scmp.eq.s32.totalorder %s18, 0
      %p59 = por %p57, %p58
      %p60 = scmp.ne.s32.totalorder %s52, %s54
      %p61 = scmp.eq.s32.totalorder %s23, 1
      %p62 = por %p60, %p61
      %p63 = scmp.ne.s32.totalorder %s54, %s55
      %p64 = scmp.eq.s32.totalorder %s23, 0
      %p65 = por %p63, %p64
      %p66 = scmp.ne.s32.totalorder %s54, %s55
      %p67 = scmp.eq.s32.totalorder %s24, 1
      %p68 = por %p66, %p67
      %p70 = scmp.ne.s32.totalorder %s55, %s69
      %p71 = scmp.eq.s32.totalorder %s24, 0
      %p72 = por %p70, %p71
      %s74 = sadd.s32 %s73, 1
      %p77 = scmp.eq.s32.totalorder %s18, 1
      %p78 = scmp.ne.s32.totalorder %s73, %s75
      %p79 = scmp.eq.s32.totalorder %s18, 0
      %p80 = por %p78, %p79
      %p81 = scmp.ne.s32.totalorder %s73, %s75
      %p82 = scmp.eq.s32.totalorder %s23, 1
      %p83 = por %p81, %p82
      %p84 = scmp.ne.s32.totalorder %s75, %s76
      %p85 = scmp.eq.s32.totalorder %s23, 0
      %p86 = por %p84, %p85
      %p87 = scmp.ne.s32.totalorder %s75, %s76
      %p88 = scmp.eq.s32.totalorder %s24, 1
      %p89 = por %p87, %p88
      %p91 = scmp.ne.s32.totalorder %s76, %s90
      %p92 = scmp.eq.s32.totalorder %s24, 0
      %p93 = por %p91, %p92
      %s95 = sadd.s32 %s94, 1
      %p98 = scmp.eq.s32.totalorder %s18, 1
      %p99 = scmp.ne.s32.totalorder %s94, %s96
      %p100 = scmp.eq.s32.totalorder %s18, 0
      %p101 = por %p99, %p100
      %p102 = scmp.ne.s32.totalorder %s94, %s96
      %p103 = scmp.eq.s32.totalorder %s23, 1
      %p104 = por %p102, %p103
      %p105 = scmp.ne.s32.totalorder %s96, %s97
      %p106 = scmp.eq.s32.totalorder %s23, 0
      %p107 = por %p105, %p106
      %p108 = scmp.ne.s32.totalorder %s96, %s97
      %p109 = scmp.eq.s32.totalorder %s24, 1
      %p110 = por %p108, %p109
      %p112 = scmp.ne.s32.totalorder %s97, %s111
      %p113 = scmp.eq.s32.totalorder %s24, 0
      %p114 = por %p112, %p113
      %s115 = ssub.s32 %s18, %s25
      %p116 = scmp.eq.s32.totalorder %s115, 0
      %s118 = sadd.s32 %s117, 1
      %s119 = scalar_select %p116, %s117, %s118
      %p122 = pneg %p116
      %p123 = scmp.eq.s32.totalorder %s18, 1
      %p124 = por %p122, %p123
      %p125 = scmp.ne.s32.totalorder %s117, %s120
      %p126 = scmp.eq.s32.totalorder %s18, 0
      %p127 = por %p125, %p126
      %p128 = scmp.ne.s32.totalorder %s117, %s120
      %p129 = scmp.eq.s32.totalorder %s23, 1
      %p130 = por %p128, %p129
      %p131 = scmp.ne.s32.totalorder %s120, %s121
      %p132 = scmp.eq.s32.totalorder %s23, 0
      %p133 = por %p131, %p132
      %p134 = scmp.ne.s32.totalorder %s120, %s121
      %p135 = scmp.eq.s32.totalorder %s24, 1
      %p136 = por %p134, %p135
      %p138 = scmp.ne.s32.totalorder %s121, %s137
      %p139 = scmp.eq.s32.totalorder %s24, 0
      %p140 = por %p138, %p139
      %p141 = scmp.le.s32.totalorder 1, %s18
      %p142 = scmp.lt.s32.totalorder %s18, 3
      %p143 = pnand %p141, %p142
      %p144 = pneg %p143
      // Predicated region
      $region9: #{tpu_custom_call.1} parent=5 // pred_check
        _
      $region10: #{tpu_custom_call.1} parent=5 // pred_check_branch
        %146 = sbr.rel (%p143) target = $region12
      $region11: #{tpu_custom_call.1} parent=5 // pred_region
        %s147 = ssub.s32 %s18, 1
        // Predicated region
        $region13: #{tpu_custom_call.1} parent=11 // pred_check
          %p148 = pneg %p65
        $region14: #{tpu_custom_call.1} parent=11 // pred_check_branch
          %150 = sbr.rel (%p148) target = $region16
        $region15: #{tpu_custom_call.1} parent=11 // pred_region
          %s152 = ssub.s32 64, 64
          %153 = vsyncadd [#allocation7], %s152
          %s155 = sshll.u32 [#allocation6], 4
          %s156 = int_to_ptr.vmem [resolvable:$true] %s155
          %158 = dma.hbm_to_vmem [thread:$0]  %s1, 64, %s156, [#allocation7]
        $region16: #{tpu_custom_call.1} parent=11 // pred_fallthru
          _
        // Predicated region
        $region17: #{tpu_custom_call.1} parent=11 // pred_check
          %p159 = pneg %p86
        $region18: #{tpu_custom_call.1} parent=11 // pred_check_branch
          %161 = sbr.rel (%p159) target = $region20
        $region19: #{tpu_custom_call.1} parent=11 // pred_region
          %s163 = ssub.s32 64, 64
          %164 = vsyncadd [#allocation7], %s163
          %s166 = sshll.u32 [#allocation8], 4
          %s167 = int_to_ptr.vmem [resolvable:$true] %s166
          %169 = dma.hbm_to_vmem [thread:$0]  %s2, 64, %s167, [#allocation7]
        $region20: #{tpu_custom_call.1} parent=11 // pred_fallthru
          _
        // Predicated region
        $region21: #{tpu_custom_call.1} parent=11 // pred_check
          %p170 = pneg %p107
        $region22: #{tpu_custom_call.1} parent=11 // pred_check_branch
          %172 = sbr.rel (%p170) target = $region24
        $region23: #{tpu_custom_call.1} parent=11 // pred_region
          %s174 = ssub.s32 288, 288
          %175 = vsyncadd [#allocation10], %s174
          %s176 = sshll.u32 [#allocation9], 4
          %s177 = int_to_ptr.vmem [resolvable:$true] %s176
          %182 = dma.hbm_to_vmem [thread:$0]  %s3, 288, %s177, [#allocation10], 32, 32, 2
        $region24: #{tpu_custom_call.1} parent=11 // pred_fallthru
          _
      $region12: #{tpu_custom_call.1} parent=5 // pred_fallthru
        _
      %p183 = scmp.lt.s32.totalorder %s18, 2
      // Predicated region
      $region25: #{tpu_custom_call.1} parent=5 // pred_check
        %p184 = pneg %p183
      $region26: #{tpu_custom_call.1} parent=5 // pred_check_branch
        %186 = sbr.rel (%p184) target = $region28
      $region27: #{tpu_custom_call.1} parent=5 // pred_region
        // Predicated region
        $region29: #{tpu_custom_call.1} parent=27 // pred_check
          %p187 = pneg %p38
        $region30: #{tpu_custom_call.1} parent=27 // pred_check_branch
          %189 = sbr.rel (%p187) target = $region32
        $region31: #{tpu_custom_call.1} parent=27 // pred_region
          %s190 = sand.u32 %s28, 1
          %s191 = scalar_lea.sflag [#allocation4], %s190
          %s192 = sand.u32 %s28, 1
          %s193 = smul.addr %s192, 8
          %s194 = scalar_lea.vmem [#allocation3], %s193
          %s196 = ssub.s32 128, 128
          %197 = vsyncadd %s191, %s196
          %s198 = smul.addr %s18, 2
          %s199 = smul.addr %s198, 64
          %s200 = scalar_lea.hbm %s0, %s199
          %s202 = sshll.u32 %s194, 4
          %s203 = int_to_ptr.vmem [resolvable:$true] %s202
          %205 = dma.hbm_to_vmem [thread:$0]  %s200, 128, %s203, %s191
        $region32: #{tpu_custom_call.1} parent=27 // pred_fallthru
          _
      $region28: #{tpu_custom_call.1} parent=5 // pred_fallthru
        _
      %p206 = scmp.le.s32.totalorder 1, %s18
      %p207 = scmp.lt.s32.totalorder %s18, 3
      %p208 = pnand %p206, %p207
      %p209 = pneg %p208
      // Predicated region
      $region33: #{tpu_custom_call.1} parent=5 // pred_check
        _
      $region34: #{tpu_custom_call.1} parent=5 // pred_check_branch
        %211 = sbr.rel (%p208) target = $region36
      $region35: #{tpu_custom_call.1} parent=5 // pred_region
        %s212 = ssub.s32 %s18, 1
        %s213 = sand.u32 %s31, 1
        %s214 = scalar_lea.sflag [#allocation4], %s213
        %s215 = sand.u32 %s31, 1
        %s216 = smul.addr %s215, 8
        %s217 = scalar_lea.vmem [#allocation3], %s216
        // Predicated region
        $region37: #{tpu_custom_call.1} parent=35 // pred_check
          %p218 = pneg %p44
        $region38: #{tpu_custom_call.1} parent=35 // pred_check_branch
          %220 = sbr.rel (%p218) target = $region40
        $region39: #{tpu_custom_call.1} parent=35 // pred_region
          %221 = dma.done %s214, 128
        $region40: #{tpu_custom_call.1} parent=35 // pred_fallthru
          _
        // Predicated region
        $region41: #{tpu_custom_call.1} parent=35 // pred_check
          %p222 = pneg %p65
        $region42: #{tpu_custom_call.1} parent=35 // pred_check_branch
          %224 = sbr.rel (%p222) target = $region44
        $region43: #{tpu_custom_call.1} parent=35 // pred_region
          %225 = dma.done [#allocation7], 64
        $region44: #{tpu_custom_call.1} parent=35 // pred_fallthru
          _
        // Predicated region
        $region45: #{tpu_custom_call.1} parent=35 // pred_check
          %p226 = pneg %p86
        $region46: #{tpu_custom_call.1} parent=35 // pred_check_branch
          %228 = sbr.rel (%p226) target = $region48
        $region47: #{tpu_custom_call.1} parent=35 // pred_region
          %229 = dma.done [#allocation7], 64
        $region48: #{tpu_custom_call.1} parent=35 // pred_fallthru
          _
        // Predicated region
        $region49: #{tpu_custom_call.1} parent=35 // pred_check
          %p230 = pneg %p107
        $region50: #{tpu_custom_call.1} parent=35 // pred_check_branch
          %232 = sbr.rel (%p230) target = $region52
        $region51: #{tpu_custom_call.1} parent=35 // pred_region
          %233 = dma.done [#allocation10], 288
        $region52: #{tpu_custom_call.1} parent=35 // pred_fallthru
          _
        %s234 = sand.u32 %s31, 1
        %s235 = scalar_lea.sflag [#allocation4], %s234
        %s236 = sand.u32 %s31, 1
        %s237 = smul.addr %s236, 8
        %s238 = scalar_lea.vmem [#allocation3], %s237
        %p239 = pneg %p44
        %p240 = pneg %p41
        %p241 = pneg %p65
        %p242 = pneg %p62
        %p243 = pneg %p86
        %p244 = pneg %p83
        %p245 = pneg %p107
        %p246 = pneg %p104
        %p247 = pneg %p133
        %p248 = pneg %p130
        %s249 = sand.u32 %s120, 1
        %s250 = scalar_lea.sflag [#allocation5], %s249
        %s251 = sand.u32 %s120, 1
        %s252 = smul.addr %s251, 8
        %s253 = scalar_lea.vmem [#allocation11], %s252
        %p254 = scmp.eq.s32.totalorder %s23, 0
        // Predicated region
        $region53: #{tpu_custom_call.1} parent=35 // pred_check
          %p255 = pneg %p254
        $region54: #{tpu_custom_call.1} parent=35 // pred_check_branch
          %257 = sbr.rel (%p255) target = $region56
        $region55: #{tpu_custom_call.1} parent=35 // pred_region
          %258 = vst [vmem:[#allocation2] sm:$0xff] 0.0
          %259 = vst [vmem:[#allocation2 + $0x8] sm:$0xff] 0.0
          %260 = vst [vmem:[#allocation2 + $0x10] sm:$0xff] 0.0
          %261 = vst [vmem:[#allocation2 + $0x18] sm:$0xff] 0.0
          %262 = vst [vmem:[#allocation2 + $0x20] sm:$0xff] 0.0
          %263 = vst [vmem:[#allocation2 + $0x28] sm:$0xff] 0.0
          %264 = vst [vmem:[#allocation2 + $0x30] sm:$0xff] 0.0
          %265 = vst [vmem:[#allocation2 + $0x38] sm:$0xff] 0.0
          %266 = vst [vmem:[#allocation2 + $0x40] sm:$0xff] 0.0
          %267 = vst [vmem:[#allocation2 + $0x48] sm:$0xff] 0.0
          %268 = vst [vmem:[#allocation2 + $0x50] sm:$0xff] 0.0
          %269 = vst [vmem:[#allocation2 + $0x58] sm:$0xff] 0.0
          %270 = vst [vmem:[#allocation2 + $0x60] sm:$0xff] 0.0
          %271 = vst [vmem:[#allocation2 + $0x68] sm:$0xff] 0.0
          %272 = vst [vmem:[#allocation2 + $0x70] sm:$0xff] 0.0
          %273 = vst [vmem:[#allocation2 + $0x78] sm:$0xff] 0.0
          %274 = vst [vmem:[#allocation2 + $0x80] sm:$0xff] 0.0
          %275 = vst [vmem:[#allocation2 + $0x88] sm:$0xff] 0.0
        $region56: #{tpu_custom_call.1} parent=35 // pred_fallthru
          _
        %v276 = vld [vmem:[%s217] sm:$0xff]
        %v278 = vcombine.high %v276, %v276
        %280 = vrot.lane.b32.xlu0 %v276, 17
        %v281 = vpop.permute.xlu0 %280
        %282 = vrot.lane.b32.xlu0 %v278, 17
        %v283 = vpop.permute.xlu0 %282
        %v284 = vlaneseq
        %v285 = vand.u32 %v284, 127
        %vm286 = vcmp.lt.s32.totalorder %v285, 17
        %v287 = vsel %vm286, %v281, %v283
        %v288 = vsel %vm286, %v283, %v281
        %v289 = vld [vmem:[#allocation9] sm:$0x3]
        %v291 = vlaneseq
        %v292 = vshrl.u32 %v291, 7
        %v293 = vsub.s32 0, %v292
        %v294 = vrot.slane %v289, %v293
        %v295 = vlaneseq
        %v296 = vshrl.u32 %v295, 7
        %v297 = vsub.s32 1, %v296
        %v298 = vrot.slane %v289, %v297
        %v301 = vmul.f32 %v288, %v294
        %v302 = vmul.f32 %v287, %v298
        %303 = vst [vmem:[#allocation2] sm:$0xf] %v301
        %304 = vst [vmem:[#allocation2 + $0x8] sm:$0xf] %v302
        %305 = vrot.lane.b32.xlu0 %v276, 16
        %v306 = vpop.permute.xlu0 %305
        %307 = vrot.lane.b32.xlu0 %v278, 16
        %v308 = vpop.permute.xlu0 %307
        %vm309 = vcmp.lt.s32.totalorder %v285, 16
        %v310 = vsel %vm309, %v306, %v308
        %v311 = vsel %vm309, %v308, %v306
        %s312 = scalar_lea.vmem [#allocation9], 2
        %v313 = vld [vmem:[%s312] sm:$0x3]
        %v315 = vlaneseq
        %v316 = vshrl.u32 %v315, 7
        %v317 = vsub.s32 0, %v316
        %v318 = vrot.slane %v313, %v317
        %v319 = vlaneseq
        %v320 = vshrl.u32 %v319, 7
        %v321 = vsub.s32 1, %v320
        %v322 = vrot.slane %v313, %v321
        %v325 = vmul.f32 %v311, %v318
        %v326 = vmul.f32 %v310, %v322
        %327 = vst [vmem:[#allocation2 + $0x10] sm:$0xf] %v325
        %328 = vst [vmem:[#allocation2 + $0x18] sm:$0xf] %v326
        %329 = vrot.lane.b32.xlu0 %v276, 15
        %v330 = vpop.permute.xlu0 %329
        %331 = vrot.lane.b32.xlu0 %v278, 15
        %v332 = vpop.permute.xlu0 %331
        %vm333 = vcmp.lt.s32.totalorder %v285, 15
        %v334 = vsel %vm333, %v330, %v332
        %v335 = vsel %vm333, %v332, %v330
        %s336 = scalar_lea.vmem [#allocation9], 4
        %v337 = vld [vmem:[%s336] sm:$0x3]
        %v339 = vlaneseq
        %v340 = vshrl.u32 %v339, 7
        %v341 = vsub.s32 0, %v340
        %v342 = vrot.slane %v337, %v341
        %v343 = vlaneseq
        %v344 = vshrl.u32 %v343, 7
        %v345 = vsub.s32 1, %v344
        %v346 = vrot.slane %v337, %v345
        %v349 = vmul.f32 %v335, %v342
        %v350 = vmul.f32 %v334, %v346
        %351 = vst [vmem:[#allocation2 + $0x20] sm:$0xf] %v349
        %352 = vst [vmem:[#allocation2 + $0x28] sm:$0xf] %v350
        %353 = vrot.lane.b32.xlu0 %v276, 1
        %v354 = vpop.permute.xlu0 %353
        %355 = vrot.lane.b32.xlu0 %v278, 1
        %v356 = vpop.permute.xlu0 %355
        %vm357 = vcmp.lt.s32.totalorder %v285, 1
        %v358 = vsel %vm357, %v354, %v356
        %v359 = vsel %vm357, %v356, %v354
        %s360 = scalar_lea.vmem [#allocation9], 6
        %v361 = vld [vmem:[%s360] sm:$0x3]
        %v363 = vlaneseq
        %v364 = vshrl.u32 %v363, 7
        %v365 = vsub.s32 0, %v364
        %v366 = vrot.slane %v361, %v365
        %v367 = vlaneseq
        %v368 = vshrl.u32 %v367, 7
        %v369 = vsub.s32 1, %v368
        %v370 = vrot.slane %v361, %v369
        %v373 = vmul.f32 %v359, %v366
        %v374 = vmul.f32 %v358, %v370
        %375 = vst [vmem:[#allocation2 + $0x30] sm:$0xf] %v373
        %376 = vst [vmem:[#allocation2 + $0x38] sm:$0xf] %v374
        %377 = vst [vmem:[#allocation2 + $0x40] sm:$0xf] %v276
        %378 = vst [vmem:[#allocation2 + $0x48] sm:$0xf] %v278
        %379 = vrot.lane.b32.xlu0 %v276, 127
        %v380 = vpop.permute.xlu0 %379
        %381 = vrot.lane.b32.xlu0 %v278, 127
        %v382 = vpop.permute.xlu0 %381
        %vm383 = vcmp.lt.s32.totalorder %v285, 127
        %v384 = vsel %vm383, %v380, %v382
        %v385 = vsel %vm383, %v382, %v380
        %s386 = scalar_lea.vmem [#allocation9], 10
        %v387 = vld [vmem:[%s386] sm:$0x3]
        %v389 = vlaneseq
        %v390 = vshrl.u32 %v389, 7
        %v391 = vsub.s32 0, %v390
        %v392 = vrot.slane %v387, %v391
        %v393 = vlaneseq
        %v394 = vshrl.u32 %v393, 7
        %v395 = vsub.s32 1, %v394
        %v396 = vrot.slane %v387, %v395
        %v399 = vmul.f32 %v384, %v392
        %v400 = vmul.f32 %v385, %v396
        %401 = vst [vmem:[#allocation2 + $0x50] sm:$0xf] %v399
        %402 = vst [vmem:[#allocation2 + $0x58] sm:$0xf] %v400
        %403 = vrot.lane.b32.xlu0 %v276, 113
        %v404 = vpop.permute.xlu0 %403
        %405 = vrot.lane.b32.xlu0 %v278, 113
        %v406 = vpop.permute.xlu0 %405
        %vm407 = vcmp.lt.s32.totalorder %v285, 113
        %v408 = vsel %vm407, %v404, %v406
        %v409 = vsel %vm407, %v406, %v404
        %s410 = scalar_lea.vmem [#allocation9], 12
        %v411 = vld [vmem:[%s410] sm:$0x3]
        %v413 = vlaneseq
        %v414 = vshrl.u32 %v413, 7
        %v415 = vsub.s32 0, %v414
        %v416 = vrot.slane %v411, %v415
        %v417 = vlaneseq
        %v418 = vshrl.u32 %v417, 7
        %v419 = vsub.s32 1, %v418
        %v420 = vrot.slane %v411, %v419
        %v423 = vmul.f32 %v408, %v416
        %v424 = vmul.f32 %v409, %v420
        %425 = vst [vmem:[#allocation2 + $0x60] sm:$0xf] %v423
        %426 = vst [vmem:[#allocation2 + $0x68] sm:$0xf] %v424
        %427 = vrot.lane.b32.xlu0 %v276, 112
        %v428 = vpop.permute.xlu0 %427
        %429 = vrot.lane.b32.xlu0 %v278, 112
        %v430 = vpop.permute.xlu0 %429
        %vm431 = vcmp.lt.s32.totalorder %v285, 112
        %v432 = vsel %vm431, %v428, %v430
        %v433 = vsel %vm431, %v430, %v428
        %s434 = scalar_lea.vmem [#allocation9], 14
        %v435 = vld [vmem:[%s434] sm:$0x3]
        %v437 = vlaneseq
        %v438 = vshrl.u32 %v437, 7
        %v439 = vsub.s32 0, %v438
        %v440 = vrot.slane %v435, %v439
        %v441 = vlaneseq
        %v442 = vshrl.u32 %v441, 7
        %v443 = vsub.s32 1, %v442
        %v444 = vrot.slane %v435, %v443
        %v447 = vmul.f32 %v432, %v440
        %v448 = vmul.f32 %v433, %v444
        %449 = vst [vmem:[#allocation2 + $0x70] sm:$0xf] %v447
        %450 = vst [vmem:[#allocation2 + $0x78] sm:$0xf] %v448
        %451 = vrot.lane.b32.xlu0 %v276, 111
        %v452 = vpop.permute.xlu0 %451
        %453 = vrot.lane.b32.xlu0 %v278, 111
        %v454 = vpop.permute.xlu0 %453
        %vm455 = vcmp.lt.s32.totalorder %v285, 111
        %v456 = vsel %vm455, %v452, %v454
        %v457 = vsel %vm455, %v454, %v452
        %s458 = scalar_lea.vmem [#allocation9], 16
        %v459 = vld [vmem:[%s458] sm:$0x3]
        %v461 = vlaneseq
        %v462 = vshrl.u32 %v461, 7
        %v463 = vsub.s32 0, %v462
        %v464 = vrot.slane %v459, %v463
        %v465 = vlaneseq
        %v466 = vshrl.u32 %v465, 7
        %v467 = vsub.s32 1, %v466
        %v468 = vrot.slane %v459, %v467
        %v471 = vmul.f32 %v456, %v464
        %v472 = vmul.f32 %v457, %v468
        %473 = vst [vmem:[#allocation2 + $0x80] sm:$0xf] %v471
        %474 = vst [vmem:[#allocation2 + $0x88] sm:$0xf] %v472
        %v475 = vld [vmem:[#allocation6] sm:$0xf]
        %v476 = vld [vmem:[#allocation2] sm:$0xff]
        %v477 = vld [vmem:[#allocation2 + $0x8] sm:$0xff]
        %v478 = vld [vmem:[#allocation2 + $0x10] sm:$0xff]
        %v479 = vld [vmem:[#allocation2 + $0x18] sm:$0xff]
        %v480 = vld [vmem:[#allocation2 + $0x20] sm:$0xff]
        %v481 = vld [vmem:[#allocation2 + $0x28] sm:$0xff]
        %v482 = vld [vmem:[#allocation2 + $0x30] sm:$0xff]
        %v483 = vld [vmem:[#allocation2 + $0x38] sm:$0xff]
        %v484 = vld [vmem:[#allocation2 + $0x40] sm:$0xff]
        %v485 = vld [vmem:[#allocation2 + $0x48] sm:$0xff]
        %v486 = vld [vmem:[#allocation2 + $0x50] sm:$0xff]
        %v487 = vld [vmem:[#allocation2 + $0x58] sm:$0xff]
        %v488 = vld [vmem:[#allocation2 + $0x60] sm:$0xff]
        %v489 = vld [vmem:[#allocation2 + $0x68] sm:$0xff]
        %v490 = vld [vmem:[#allocation2 + $0x70] sm:$0xff]
        %v491 = vld [vmem:[#allocation2 + $0x78] sm:$0xff]
        %v492 = vld [vmem:[#allocation2 + $0x80] sm:$0xff]
        %v493 = vld [vmem:[#allocation2 + $0x88] sm:$0xff]
        %v494 = vld [vmem:[#allocation8] sm:$0xf]
        %496 = vset.pattern.permute.xlu0 0
        %497 = vperm.xlu0 %496, %v494
        %v498 = vpop.permute.xlu0 %497
        %vm500 = vcmask 588800
        %v502 = vsel %vm500, %v475, 0
        %504 = vmatprep.subr.mxu0 %v477
        %505 = vmatpush1.msra.mxu0 %v476
        %506 = vmatprep.subr.mxu0 %v479
        %507 = vmatpush1.msra.mxu0 %v478
        %508 = vmatprep.subr.mxu0 %v481
        %509 = vmatpush1.msra.mxu0 %v480
        %510 = vmatprep.subr.mxu0 %v483
        %511 = vmatpush1.msra.mxu0 %v482
        %512 = vmatprep.subr.mxu0 %v485
        %513 = vmatpush1.msra.mxu0 %v484
        %514 = vmatprep.subr.mxu0 %v487
        %515 = vmatpush1.msra.mxu0 %v486
        %516 = vmatprep.subr.mxu0 %v489
        %517 = vmatpush1.msra.mxu0 %v488
        %518 = vmatprep.subr.mxu0 %v491
        %519 = vmatpush1.msra.mxu0 %v490
        %520 = vmatprep.subr.mxu0 %v493
        %521 = vmatpush1.msra.mxu0 %v492
        %522 = vmatprep.subr.mxu0 0.0
        %523 = vmatpush1.msra.mxu0 0.0
        %524 = vmatprep.subr.mxu0 0.0
        %525 = vmatpush1.msra.mxu0 0.0
        %526 = vmatprep.subr.mxu0 0.0
        %527 = vmatpush1.msra.mxu0 0.0
        %528 = vmatprep.subr.mxu0 0.0
        %529 = vmatpush1.msra.mxu0 0.0
        %530 = vmatprep.subr.mxu0 0.0
        %531 = vmatpush1.msra.mxu0 0.0
        %532 = vmatprep.subr.mxu0 0.0
        %533 = vmatpush1.msra.mxu0 0.0
        %534 = vmatprep.subr.mxu0 0.0
        %535 = vmatpush1.msra.mxu0 0.0
        %536 = vmatprep.subr.mxu0 0.0
        %537 = vmatpush1.msra.mxu0 0.0
        %538 = vmatprep.subr.mxu0 0.0
        %539 = vmatpush1.msra.mxu0 0.0
        %540 = vmatprep.subr.mxu0 0.0
        %541 = vmatpush1.msra.mxu0 0.0
        %542 = vmatprep.subr.mxu0 0.0
        %543 = vmatpush1.msra.mxu0 0.0
        %544 = vmatprep.subr.mxu0 0.0
        %545 = vmatpush1.msra.mxu0 0.0
        %546 = vmatprep.subr.mxu0 0.0
        %547 = vmatpush1.msra.mxu0 0.0
        %548 = vmatprep.subr.mxu0 0.0
        %549 = vmatpush1.msra.mxu0 0.0
        %550 = vmatprep.subr.mxu0 0.0
        %551 = vmatpush1.msra.mxu0 0.0
        %552 = vmatprep.subr.mxu0 0.0
        %553 = vmatpush1.msra.mxu0 0.0
        %554 = vmatprep.subr.mxu0 0.0
        %555 = vmatpush1.msra.mxu0 0.0
        %556 = vmatprep.subr.mxu0 0.0
        %557 = vmatpush1.msra.mxu0 0.0
        %558 = vmatprep.subr.mxu0 0.0
        %559 = vmatpush1.msra.mxu0 0.0
        %560 = vmatprep.subr.mxu0 0.0
        %561 = vmatpush1.msra.mxu0 0.0
        %562 = vmatprep.subr.mxu0 0.0
        %563 = vmatpush1.msra.mxu0 0.0
        %564 = vmatprep.subr.mxu0 0.0
        %565 = vmatpush1.msra.mxu0 0.0
        %566 = vmatprep.subr.mxu0 0.0
        %567 = vmatpush1.msra.mxu0 0.0
        %568 = vmatprep.mubr.f32.mxu0 0.0
        %569 = vmatmul.mubr.f32.gmra.mrb[0].mxu0 %v502
        %v570 = vpop.f32.mrb[0].mxu0
        %v571 = vadd.f32 %v498, %v570
        %v572 = vpop.f32.mrb[0].mxu0
        %v573 = vadd.f32 %v498, %v572
        %574 = vdwg.mxu0
        %v575 = vmax.f32 %v571, 0.0
        %v576 = vmax.f32 %v573, 0.0
        %v579 = vcombine.low %v575, %v576
        %581 = vst [vmem:[%s253] sm:$0xff] %v579
        %s582 = sand.u32 %s120, 1
        %s583 = scalar_lea.sflag [#allocation5], %s582
        %s584 = sand.u32 %s120, 1
        %s585 = smul.addr %s584, 8
        %s586 = scalar_lea.vmem [#allocation11], %s585
        // Predicated region
        $region57: #{tpu_custom_call.1} parent=35 // pred_check
          %p587 = pneg %p130
        $region58: #{tpu_custom_call.1} parent=35 // pred_check_branch
          %589 = sbr.rel (%p587) target = $region60
        $region59: #{tpu_custom_call.1} parent=35 // pred_region
          %s591 = ssub.s32 128, 128
          %592 = vsyncadd %s583, %s591
          %s593 = smul.addr %s23, 2
          %s594 = smul.addr %s593, 64
          %s595 = scalar_lea.hbm %s4, %s594
          %s597 = sshll.u32 %s586, 4
          %s598 = int_to_ptr.vmem [resolvable:$true] %s597
          %600 = dma.vmem_to_hbm [thread:$0]  %s598, 128, %s595, %s583
        $region60: #{tpu_custom_call.1} parent=35 // pred_fallthru
          _
      $region36: #{tpu_custom_call.1} parent=5 // pred_fallthru
        _
      %p601 = scmp.le.s32.totalorder 2, %s18
      // Predicated region
      $region61: #{tpu_custom_call.1} parent=5 // pred_check
        %p602 = pneg %p601
      $region62: #{tpu_custom_call.1} parent=5 // pred_check_branch
        %604 = sbr.rel (%p602) target = $region64
      $region63: #{tpu_custom_call.1} parent=5 // pred_region
        %s605 = ssub.s32 %s18, 2
        // Predicated region
        $region65: #{tpu_custom_call.1} parent=63 // pred_check
          %p606 = pneg %p136
        $region66: #{tpu_custom_call.1} parent=63 // pred_check_branch
          %608 = sbr.rel (%p606) target = $region68
        $region67: #{tpu_custom_call.1} parent=63 // pred_region
          %s609 = sand.u32 %s121, 1
          %s610 = scalar_lea.sflag [#allocation5], %s609
          %s611 = sand.u32 %s121, 1
          %s612 = smul.addr %s611, 8
          %s613 = scalar_lea.vmem [#allocation11], %s612
          %614 = dma.done %s610, 128
        $region68: #{tpu_custom_call.1} parent=63 // pred_fallthru
          _
      $region64: #{tpu_custom_call.1} parent=5 // pred_fallthru
        _
    $region6: #{tpu_custom_call.1} parent=1 // loop_footer
      %s22 = sadd.s32 1, %s18
    $region7: #{tpu_custom_call.1} parent=1 // loop_footer_branch
      %17 = sbr.rel target = $region3
    $region8: #{tpu_custom_call.1} parent=1 // loop_exit
      _
    %615 = vsyncpa [#allocation4], 1
    %s616 = scalar_lea.sflag [#allocation4], 1
    %617 = vsyncpa %s616, 1
    %618 = vsyncpa [#allocation7], 1
    %619 = vsyncpa [#allocation10], 1
    %620 = vsyncpa [#allocation5], 1
    %s621 = scalar_lea.sflag [#allocation5], 1
    %622 = vsyncpa %s621, 1

</llo_original>
